<compile_context>
chip_gen: v7x
topology: tpu7x:2x2x1
jax: 0.10.0
libtpu: 0.0.40
codegen_flags: <defaults>
</compile_context>

<pallas_src>
import math
import numpy as np
import jax
import jax.numpy as jnp
from jax.experimental import pallas as pl
from jax.experimental.pallas import tpu as pltpu


_LANE = 128
_MIN_GRID_STEPS = 8          # >= 4 steps per TensorCore on v7x's 2 TCs
_MAX_TILE_BYTES = 12 << 20   # 4*tile + extras must stay under ~56 MiB scoped VMEM
_MAX_VMEM_LIMIT = 56 << 20   # < v7x's 64 MiB physical VMEM


def _mask_mul_kernel(mask_ref, x_ref, o_ref):
    # mask_ref: (1, TC)  -- constant over row blocks, follows the column block
    # x_ref / o_ref: (TR, TC)
    o_ref[...] = x_ref[...] * mask_ref[...]


def _sublane_unit(itemsize):
    # One packed vreg holds 8 f32 / 16 bf16 / 32 int8 sublanes.
    return {1: 32, 2: 16, 4: 8, 8: 8}.get(int(itemsize), 8)


def _plan_layout(B, C, H, W):
    """Pick a lane-dense 2-D (rows, cols) view of the row-major (B,C,H,W) stream."""
    HW = H * W
    total = B * C * HW
    if HW % _LANE == 0:
        return "rows", B * C, HW
    L = (HW * _LANE) // math.gcd(HW, _LANE)      # lcm(HW, 128)
    if total % L == 0:
        return "flat", total // L, L
    # TODO(synk): general periodic repack (mask period not dividing a 128-multiple
    # row width) would need a (P, 128) resident mask block + grouped broadcast;
    # fall back to the correct but tail-masked row layout instead.
    return "rows", B * C, HW


def _plan_tiles(n_rows, n_cols, itemsize, target_tile_bytes):
    """Largest sublane/lane-aligned tile within the budget, while keeping
    >= _MIN_GRID_STEPS grid steps whenever the problem is big enough."""
    sub = _sublane_unit(itemsize)
    target = max(int(target_tile_bytes), sub * _LANE * itemsize)
    target = min(target, _MAX_TILE_BYTES)

    # Column tiling only when even a `sub`-row strip of full width overflows the
    # budget (very large HW); requires a 128-divisible width to stay legal.
    if n_cols % _LANE == 0 and n_cols * sub * itemsize > target:
        tile_cols = max(_LANE, ((target // (sub * itemsize)) // _LANE) * _LANE)
        tile_cols = min(tile_cols, n_cols)
    else:
        tile_cols = n_cols
    col_steps = -(-n_cols // tile_cols)

    row_bytes = tile_cols * itemsize
    budget_rows = max(sub, ((target // row_bytes) // sub) * sub)

    # Keep >= _MIN_GRID_STEPS total grid steps so input prefetch / output
    # writeback overlap and both v7x TensorCores get work.
    needed_row_steps = max(1, -(-_MIN_GRID_STEPS // col_steps))
    cap_rows = -(-n_rows // needed_row_steps)
    cap_rows = max(sub, -(-cap_rows // sub) * sub)

    tile_rows = min(budget_rows, cap_rows)
    if tile_rows >= n_rows:
        tile_rows = n_rows                       # full-extent block is always legal
    return tile_rows, tile_cols


def mask_generator_forward(x, mask_hw, *, target_tile_bytes=8 << 20,
                           donate_x=False):
    """y[b, c, h, w] = x[b, c, h, w] * mask[h, w] via a lane-dense Pallas kernel."""
    B, C, H, W = x.shape
    HW = H * W
    assert mask_hw.shape == (H, W)
    itemsize = int(x.dtype.itemsize)

    mode, n_rows, n_cols = _plan_layout(B, C, H, W)
    x2d = x.reshape(n_rows, n_cols)              # pure row-major reinterpretation
    mask_1d = mask_hw.astype(x.dtype).reshape(-1)
    if mode == "flat":
        # Each row of width L = lcm(HW, 128) holds exactly L/HW full mask periods,
        # so a (1, L) broadcast applies the correct per-element mask.
        mask_row = jnp.tile(mask_1d, n_cols // HW).reshape(1, n_cols)
    else:
        mask_row = mask_1d.reshape(1, n_cols)

    tile_rows, tile_cols = _plan_tiles(n_rows, n_cols, itemsize, target_tile_bytes)
    grid = (pl.cdiv(n_rows, tile_rows), pl.cdiv(n_cols, tile_cols))

    tile_bytes = tile_rows * tile_cols * itemsize
    mask_blk_bytes = tile_cols * itemsize
    vmem_limit = min(_MAX_VMEM_LIMIT,
                     max(32 << 20, 4 * tile_bytes + 2 * mask_blk_bytes + (2 << 20)))

    total_bytes = n_rows * n_cols * itemsize
    cost = pl.CostEstimate(flops=n_rows * n_cols,
                           transcendentals=0,
                           bytes_accessed=2 * total_bytes + n_cols * itemsize)

    y2d = pl.pallas_call(
        _mask_mul_kernel,
        out_shape=jax.ShapeDtypeStruct((n_rows, n_cols), x.dtype),
        grid_spec=pltpu.PrefetchScalarGridSpec(
            num_scalar_prefetch=0,
            grid=grid,
            in_specs=[
                # mask: constant row block, follows the column block -> VMEM-resident
                pl.BlockSpec((1, tile_cols), lambda r, c: (0, c)),
                pl.BlockSpec((tile_rows, tile_cols), lambda r, c: (r, c)),
            ],
            out_specs=pl.BlockSpec((tile_rows, tile_cols), lambda r, c: (r, c)),
        ),
        compiler_params=pltpu.CompilerParams(
            dimension_semantics=("parallel", "parallel"),
            vmem_limit_bytes=int(vmem_limit),
        ),
        cost_estimate=cost,
        input_output_aliases={1: 0} if donate_x else {},
    )(mask_row, x2d)

    return y2d.reshape(B, C, H, W)


def make_mask(key, input_size, mask_patch_size, model_patch_size, mask_ratio):
    """Build the (H, W) 0/1 mask exactly as MaskGenerator does, but
    deterministically with jax.random instead of np.random.permutation."""
    assert input_size % mask_patch_size == 0
    assert mask_patch_size % model_patch_size == 0
    rand_size = input_size // mask_patch_size
    scale = mask_patch_size // model_patch_size
    token_count = rand_size ** 2
    mask_count = int(np.ceil(token_count * mask_ratio))

    perm = jax.random.permutation(key, token_count)
    mask_idx = perm[:mask_count]
    mask = jnp.zeros((token_count,), dtype=jnp.int32).at[mask_idx].set(1)
    mask = mask.reshape(rand_size, rand_size)
    mask = jnp.repeat(jnp.repeat(mask, scale, axis=0), scale, axis=1)
    return mask  # (rand_size*scale, rand_size*scale) = (H, W)


def _check(x, mask_hw, **kw):
    y = jax.block_until_ready(mask_generator_forward(x, mask_hw, **kw))
    y_ref = x * mask_hw.astype(x.dtype)[None, None, :, :]
    np.testing.assert_allclose(np.asarray(y), np.asarray(y_ref), rtol=0, atol=0)


if __name__ == "__main__":
    key = jax.random.PRNGKey(0)
    k1, k2, k3, k4, k5, k6 = jax.random.split(key, 6)

    # --- 1) Small demo consistent with the module (flat lane-dense path) --------
    # input_size=16, mask_patch_size=8, model_patch_size=2, mask_ratio=0.6
    #   -> rand_size=2, scale=4, H=W=8 ; x is NCHW with C=3 (mask.repeat(3,1,1)).
    H8 = 16 // 2
    x = jax.random.normal(k1, (2, 3, H8, H8), dtype=jnp.float32)
    mask8 = make_mask(k2, 16, 8, 2, 0.6)
    _check(x, mask8)

    # --- 2) HW % 128 == 0 (row layout path): input_size=64, patches 16/4 -> H=W=16
    H16 = 64 // 4
    mask16 = make_mask(k3, 64, 16, 4, 0.6)
    x2 = jax.random.normal(k4, (2, 3, H16, H16), dtype=jnp.float32)
    _check(x2, mask16)

    # --- 3) Multi-step row grid + partial last block (tiny tile budget on purpose)
    x3 = jax.random.normal(k5, (5, 3, H16, H16), dtype=jnp.float32)
    _check(x3, mask16, target_tile_bytes=8192)

    # --- 4) Column-tiled grid (mask block follows the column index) -------------
    _check(x3, mask16, target_tile_bytes=4096)

    # --- 5) Fallback (total not divisible by 128): still exact, tail-masked stores
    x4 = jax.random.normal(k6, (1, 3, H8, H8), dtype=jnp.float32)
    _check(x4, mask8)

    print("KERNEL_OK")
</pallas_src>

<mosaic_0001>
module attributes {stable_mosaic.version = 11 : i64} {
  func.func @_mask_mul_kernel(%arg0: i32, %arg1: i32, %arg2: memref<1x128xf32, #tpu.memory_space<vmem>>, %arg3: memref<3x128xf32, #tpu.memory_space<vmem>>, %arg4: memref<3x128xf32, #tpu.memory_space<vmem>>) attributes {dimension_semantics = [#tpu.dimension_semantics<parallel>, #tpu.dimension_semantics<parallel>], iteration_bounds = array<i64: 1, 1>, scalar_prefetch = 0 : i64, scratch_operands = 0 : i64, tpu.core_type = #tpu.core_type<tc>, window_params = [{transform_indices = @transform_0, window_bounds = array<i64: 1, 128>}, {transform_indices = @transform_1, window_bounds = array<i64: 3, 128>}, {transform_indices = @transform_2, window_bounds = array<i64: 3, 128>}]} {
    %c0 = arith.constant 0 : index
    %c0_0 = arith.constant 0 : index
    %0 = vector.load %arg3[%c0, %c0_0] : memref<3x128xf32, #tpu.memory_space<vmem>>, vector<3x128xf32>
    %c0_1 = arith.constant 0 : index
    %c0_2 = arith.constant 0 : index
    %1 = vector.load %arg2[%c0_1, %c0_2] : memref<1x128xf32, #tpu.memory_space<vmem>>, vector<1x128xf32>
    %2 = vector.broadcast %1 : vector<1x128xf32> to vector<3x128xf32>
    %3 = arith.mulf %0, %2 : vector<3x128xf32>
    %c0_3 = arith.constant 0 : index
    %c0_4 = arith.constant 0 : index
    %4 = vector.load %arg4[%c0_3, %c0_4] : memref<3x128xf32, #tpu.memory_space<vmem>>, vector<3x128xf32>
    tpu.vector_store %arg4[%c0_3, %c0_4], %3 {strides = array<i32>} : memref<3x128xf32, #tpu.memory_space<vmem>>, vector<3x128xf32>,
    return
  }
  func.func @transform_0(%arg0: i32, %arg1: i32) -> (i32, i32) {
    %c0_i32 = arith.constant 0 : i32
    %c0_i32_0 = arith.constant 0 : i32
    return %c0_i32, %arg1 : i32, i32
  }
  func.func @transform_1(%arg0: i32, %arg1: i32) -> (i32, i32) {
    %c0_i32 = arith.constant 0 : i32
    return %arg0, %arg1 : i32, i32
  }
  func.func @transform_2(%arg0: i32, %arg1: i32) -> (i32, i32) {
    %c0_i32 = arith.constant 0 : i32
    return %arg0, %arg1 : i32, i32
  }
}

</mosaic_0001>

<llo_original>
// kernel: tpu_custom_call.1
$region0: #{tpu_custom_call.1}
  #allocation0 [shape = 'u32[]', space=smem, size = 0x4, offset = 0x4, fixed_abs, tag = 'smem constant byte address 0x4 - core index']
  #allocation1 [shape = 'u32[144,128]{1,0:T(1,128)}', space=vmem, size = 0x12000, scoped, tag = 'internal scratch']
  %s0 = inlined_call_operand.hbm [shape: f32[1,128], index: 0, kind: input, shape index: {}]
  %s1 = inlined_call_operand.hbm [shape: f32[3,128], index: 1, kind: input, shape index: {}]
  %s2 = inlined_call_operand.hbm [shape: f32[3,128], index: 2, kind: output, shape index: {}]
  %s3 = sld [smem:[#allocation0]]
  $region26: #{tpu_custom_call.1} parent=0
    _
  %s5 = ssub.s32 1, %s3
  %s6 = scalar_select 0, %s5, %s3
  $region1: #{tpu_custom_call.1} parent=0
    #allocation2 [shape = 'u8[512]{0}', space=vmem, size = 0x400, scoped, tag = 'input window, operand 0, single buffered']
    #allocation3 [shape = 's32[1]{0}', space=sflag, size = 0x4, scoped, tag = 'scoped memory for tpu_custom_call.1']
    #allocation4 [shape = 's32[1]{0}', space=sflag, size = 0x4, scoped, tag = 'scoped memory for tpu_custom_call.1']
    #allocation5 [shape = 'u8[2048]{0}', space=vmem, size = 0x800, scoped, tag = 'input window, operand 1, single buffered']
    #allocation6 [shape = 's32[1]{0}', space=sflag, size = 0x4, scoped, tag = 'scoped memory for tpu_custom_call.1']
    #allocation7 [shape = 'u8[2048]{0}', space=vmem, size = 0x800, scoped, tag = 'output window, operand 0, single buffered']
    %7 = vsyncpa [#allocation3], 0
    %8 = vsyncpa [#allocation6], 0
    %9 = vsyncpa [#allocation4], 0
    // Predicated region
    $region2: #{tpu_custom_call.1} parent=1 // pred_check
      _
    $region3: #{tpu_custom_call.1} parent=1 // pred_check_branch
      %11 = sbr.rel (0) target = $region5
    $region4: #{tpu_custom_call.1} parent=1 // pred_region
      %s13 = ssub.s32 16, 16
      %14 = vsyncadd [#allocation3], %s13
      %s16 = sshll.u32 [#allocation2], 4
      %s17 = int_to_ptr.vmem [resolvable:$true] %s16
      %19 = dma.hbm_to_vmem [thread:$0]  %s0, 16, %s17, [#allocation3]
    $region5: #{tpu_custom_call.1} parent=1 // pred_fallthru
      _
    // Predicated region
    $region6: #{tpu_custom_call.1} parent=1 // pred_check
      _
    $region7: #{tpu_custom_call.1} parent=1 // pred_check_branch
      %21 = sbr.rel (0) target = $region9
    $region8: #{tpu_custom_call.1} parent=1 // pred_region
      %s23 = ssub.s32 64, 64
      %24 = vsyncadd [#allocation6], %s23
      %s26 = sshll.u32 [#allocation5], 4
      %s27 = int_to_ptr.vmem [resolvable:$true] %s26
      %29 = dma.hbm_to_vmem [thread:$0]  %s1, 64, %s27, [#allocation6]
    $region9: #{tpu_custom_call.1} parent=1 // pred_fallthru
      _
    // Predicated region
    $region10: #{tpu_custom_call.1} parent=1 // pred_check
      _
    $region11: #{tpu_custom_call.1} parent=1 // pred_check_branch
      %31 = sbr.rel (0) target = $region13
    $region12: #{tpu_custom_call.1} parent=1 // pred_region
      %32 = dma.done [#allocation3], 16
    $region13: #{tpu_custom_call.1} parent=1 // pred_fallthru
      _
    // Predicated region
    $region14: #{tpu_custom_call.1} parent=1 // pred_check
      _
    $region15: #{tpu_custom_call.1} parent=1 // pred_check_branch
      %34 = sbr.rel (0) target = $region17
    $region16: #{tpu_custom_call.1} parent=1 // pred_region
      %35 = dma.done [#allocation6], 64
    $region17: #{tpu_custom_call.1} parent=1 // pred_fallthru
      _
    %v36 = vld [vmem:[#allocation5] sm:$0x7]
    %v37 = vld [vmem:[#allocation2] sm:$0x1]
    %v39 = vlaneseq
    %v40 = vshrl.u32 %v39, 7
    %v41 = vsub.s32 0, %v40
    %v42 = vrot.slane %v37, %v41
    %v44 = vmul.f32 %v36, %v42
    %45 = vst [vmem:[#allocation7] sm:$0x7] %v44
    // Predicated region
    $region18: #{tpu_custom_call.1} parent=1 // pred_check
      _
    $region19: #{tpu_custom_call.1} parent=1 // pred_check_branch
      %47 = sbr.rel (0) target = $region21
    $region20: #{tpu_custom_call.1} parent=1 // pred_region
      %s49 = ssub.s32 64, 64
      %50 = vsyncadd [#allocation4], %s49
      %s52 = sshll.u32 [#allocation7], 4
      %s53 = int_to_ptr.vmem [resolvable:$true] %s52
      %55 = dma.vmem_to_hbm [thread:$0]  %s53, 64, %s2, [#allocation4]
    $region21: #{tpu_custom_call.1} parent=1 // pred_fallthru
      _
    // Predicated region
    $region22: #{tpu_custom_call.1} parent=1 // pred_check
      _
    $region23: #{tpu_custom_call.1} parent=1 // pred_check_branch
      %57 = sbr.rel (0) target = $region25
    $region24: #{tpu_custom_call.1} parent=1 // pred_region
      %58 = dma.done [#allocation4], 64
    $region25: #{tpu_custom_call.1} parent=1 // pred_fallthru
      _
    %59 = vsyncpa [#allocation3], 1
    %60 = vsyncpa [#allocation6], 1
    %61 = vsyncpa [#allocation4], 1

</llo_original>
